<compile_context>
chip_gen: v6e
topology: v6e:2x2x1
jax: 0.10.0
libtpu: 0.0.40
codegen_flags: <defaults>
</compile_context>

<pallas_src>
import functools

import jax
import jax.numpy as jnp
from jax import lax
from jax.experimental import pallas as pl
from jax.experimental.pallas import tpu as pltpu


def _pow(x, p):
    # focal gamma is usually 2.0; avoid generic pow when possible
    if float(p) == 2.0:
        return x * x
    return jnp.power(x, p)


def _matcher_cost_kernel(logits_ref, boxes_ref, side_ref, out_ref, *,
                         alpha, gamma, w_class, w_bbox, w_giou, n_cls, bblk):
    # bblk is small and static -> a static Python loop over the batch block.
    for b in range(bblk):
        logits = logits_ref[b]                     # [C, Q] lane-dense
        boxes = boxes_ref[b]                       # [4, Q] xyxy absolute
        side = side_ref[b]                         # [G, 4 + C + 4]

        gt = side[:, 0:4]                          # [G, 4] xyxy absolute
        onehot = side[:, 4:4 + n_cls]              # [G, C] one-hot labels
        inv = side[:, 4 + n_cls:8 + n_cls]         # [G, 4] rows identical = 1/image_size

        # ---------- focal classification cost: gather first, then focal ----------
        # onehot is an exact row selection, so onehot @ f(logits) == f(onehot @ logits);
        # bf16 operands keep the MXU in one pass, accumulation stays f32.
        tgt_logits = jnp.dot(onehot.astype(jnp.bfloat16),
                             logits.astype(jnp.bfloat16),
                             preferred_element_type=jnp.float32)         # [G, Q]
        prob = jax.nn.sigmoid(tgt_logits)
        neg = (1.0 - alpha) * _pow(prob, gamma) * (-jnp.log(1.0 - prob + 1e-8))
        pos = alpha * _pow(1.0 - prob, gamma) * (-jnp.log(prob + 1e-8))
        cost_class = pos - neg                                            # [G, Q]

        # ---------- box coordinates ----------
        bx0 = boxes[0:1, :]; by0 = boxes[1:2, :]
        bx1 = boxes[2:3, :]; by1 = boxes[3:4, :]                          # [1, Q]
        acx = 0.5 * (bx0 + bx1)
        acy = 0.5 * (by0 + by1)

        gx0 = gt[:, 0:1]; gy0 = gt[:, 1:2]
        gx1 = gt[:, 2:3]; gy1 = gt[:, 3:4]                                # [G, 1]
        gcx = 0.5 * (gx0 + gx1)
        gcy = 0.5 * (gy0 + gy1)
        gw = gx1 - gx0
        gh = gy1 - gy0

        # ---------- get_in_boxes_info (boolean masks) ----------
        in_boxes = (acx > gx0) & (acx < gx1) & (acy > gy0) & (acy < gy1)  # [G, Q]
        r = 2.5   # center radius * full gt width/height, as in the reference
        in_centers = ((acx > gcx - r * gw) & (acx < gcx + r * gw) &
                      (acy > gcy - r * gh) & (acy < gcy + r * gh))        # [G, Q]
        # or-reduce over gts via f32 max (robust lowering), then back to bool
        fg = (jnp.max(in_boxes.astype(jnp.float32), axis=0, keepdims=True) +
              jnp.max(in_centers.astype(jnp.float32), axis=0, keepdims=True)) > 0.0
        in_both = in_boxes & in_centers                                   # [G, Q]

        # ---------- pairwise IoU / GIoU (no eps, matches torchvision / DETR) ----------
        area_p = (bx1 - bx0) * (by1 - by0)                                # [1, Q]
        area_g = (gx1 - gx0) * (gy1 - gy0)                                # [G, 1]
        lt_x = jnp.maximum(bx0, gx0); lt_y = jnp.maximum(by0, gy0)
        rb_x = jnp.minimum(bx1, gx1); rb_y = jnp.minimum(by1, gy1)
        inter = jnp.maximum(rb_x - lt_x, 0.0) * jnp.maximum(rb_y - lt_y, 0.0)
        union = area_p + area_g - inter
        iou = inter / union                                               # [G, Q]

        enc_x0 = jnp.minimum(bx0, gx0); enc_y0 = jnp.minimum(by0, gy0)
        enc_x1 = jnp.maximum(bx1, gx1); enc_y1 = jnp.maximum(by1, gy1)
        enc_area = (jnp.maximum(enc_x1 - enc_x0, 0.0) *
                    jnp.maximum(enc_y1 - enc_y0, 0.0))
        giou = iou - (enc_area - union) / enc_area

        # ---------- L1 bbox cost on normalized boxes ----------
        # pred and gt share the same per-image normalization (image_size_xyxy_tgt is
        # image_size repeated per gt in the reference), so |b/s - g/s| = |b - g| * (1/s).
        cost_bbox = (jnp.abs(bx0 - gx0) * inv[:, 0:1] +
                     jnp.abs(by0 - gy0) * inv[:, 1:2] +
                     jnp.abs(bx1 - gx1) * inv[:, 2:3] +
                     jnp.abs(by1 - gy1) * inv[:, 3:4])                    # [G, Q]

        cost = (w_bbox * cost_bbox + w_class * cost_class - w_giou * giou +
                jnp.where(in_both, 0.0, 100.0) +
                jnp.where(fg, 0.0, 10000.0))                              # [G, Q]

        # single lane-dense [2G, Q] store: cost on top, iou below
        out_ref[b] = jnp.concatenate([cost, iou], axis=0)


def matcher_costs(logits_t, boxes_t, side, *, alpha, gamma, w_class, w_bbox, w_giou, bblk):
    """Returns packed [B, 2G, Q] (cost rows 0:G, iou rows G:2G)."""
    B, C, Q = logits_t.shape
    G = side.shape[1]
    assert B % bblk == 0, "bblk must divide the batch size"
    nsteps = B // bblk

    kernel = functools.partial(_matcher_cost_kernel, alpha=alpha, gamma=gamma,
                               w_class=w_class, w_bbox=w_bbox, w_giou=w_giou,
                               n_cls=C, bblk=bblk)
    grid_spec = pltpu.PrefetchScalarGridSpec(
        num_scalar_prefetch=0,
        grid=(nsteps,),
        in_specs=[
            pl.BlockSpec((bblk, C, Q), lambda i: (i, 0, 0)),
            pl.BlockSpec((bblk, 4, Q), lambda i: (i, 0, 0)),
            pl.BlockSpec((bblk, G, side.shape[2]), lambda i: (i, 0, 0)),
        ],
        out_specs=pl.BlockSpec((bblk, 2 * G, Q), lambda i: (i, 0, 0)),
    )
    return pl.pallas_call(
        kernel,
        out_shape=jax.ShapeDtypeStruct((B, 2 * G, Q), jnp.float32),
        grid_spec=grid_spec,
        # batch blocks are independent -> shards across the 2 TensorCores on v7x
        compiler_params=pltpu.CompilerParams(dimension_semantics=("parallel",)),
    )(logits_t, boxes_t, side)


def dynamic_k_matching(cost_gq, ious_gq, ota_k):
    """JAX port of HungarianMatcherDynamicK.dynamic_k_matching (per batch element).

    Takes cost/iou in [G, Q] layout (as produced by the kernel).
    Returns ((selected_query [Q] bool, gt_indices [Q] int32 valid where selected),
             matched_query_id [G] int32).
    gt_indices is full-length (masked by selected_query) since JAX needs static shapes.
    The 10000 penalty on non-fg anchors is already folded into cost by the kernel.
    """
    G, Q = cost_gq.shape
    cost = cost_gq.T                                              # [Q, G]
    topk_ious, _ = lax.top_k(ious_gq, ota_k)                      # [G, k]
    dynamic_ks = jnp.maximum(topk_ious.sum(-1).astype(jnp.int32), 1)   # [G]

    # per-gt lowest-cost `dynamic_k` anchors
    order = jnp.argsort(cost, axis=0)
    ranks = jnp.argsort(order, axis=0)
    mm = (ranks < dynamic_ks[None, :]).astype(jnp.float32)        # matching matrix [Q, G]

    anchor_matching_gt = mm.sum(1)
    # NOTE: the reference computes `anchor_matching_gt > 1` once here and reuses this
    # (stale) mask for conflict resolution inside the while loop below; we keep that
    # behavior to match the original module's forward semantics exactly.
    multi = anchor_matching_gt > 1
    row_argmin = jnp.argmin(cost, axis=1)
    mm = jnp.where(multi[:, None], jax.nn.one_hot(row_argmin, G, dtype=mm.dtype), mm)

    # while (some gt unmatched): bump cost of matched anchors, re-assign unmatched gts.
    # TODO(synk): bounded at 50 iterations for safety (reference while-loop is unbounded).
    def cond_fn(state):
        it, _cost, mm_c = state
        return jnp.logical_and(jnp.any(mm_c.sum(0) == 0), it < 50)

    def body_fn(state):
        it, cost_c, mm_c = state
        matched_query = mm_c.sum(1) > 0
        cost_c = cost_c + jnp.where(matched_query[:, None], 100000.0, 0.0)
        unmatched_col = mm_c.sum(0) == 0                          # [G]
        pos = jnp.argmin(cost_c, axis=0)                          # [G]
        add = (jnp.arange(Q)[:, None] == pos[None, :]).astype(mm_c.dtype)
        mm_c = jnp.where(unmatched_col[None, :], jnp.maximum(mm_c, add), mm_c)
        need_fix = jnp.any(mm_c.sum(1) > 1)
        row_argmin2 = jnp.argmin(cost_c, axis=1)
        mm_fixed = jnp.where(multi[:, None],
                             jax.nn.one_hot(row_argmin2, G, dtype=mm_c.dtype), mm_c)
        mm_c = jnp.where(need_fix, mm_fixed, mm_c)
        return it + 1, cost_c, mm_c

    _, cost2, mm = lax.while_loop(cond_fn, body_fn,
                                  (jnp.array(0, jnp.int32), cost, mm))

    selected_query = mm.sum(1) > 0                                # [Q] bool
    gt_indices = jnp.argmax(mm, axis=1).astype(jnp.int32)         # [Q]
    cost_masked = jnp.where(mm == 0, jnp.inf, cost2)
    matched_query_id = jnp.argmin(cost_masked, axis=0).astype(jnp.int32)   # [G]
    return (selected_query, gt_indices), matched_query_id


@functools.partial(jax.jit, static_argnames=("alpha", "gamma", "w_class", "w_bbox",
                                              "w_giou", "ota_k", "bblk"))
def _matcher_pipeline(pred_logits, pred_boxes, labels, gt_xyxy, image_size_xyxy, *,
                      alpha, gamma, w_class, w_bbox, w_giou, ota_k, bblk):
    """Single jit: layout plumbing + Pallas cost kernel + vmapped dynamic-k matching."""
    B, Q, C = pred_logits.shape
    G = labels.shape[1]

    logits_t = jnp.transpose(pred_logits, (0, 2, 1)).astype(jnp.float32)    # [B, C, Q]
    boxes_t = jnp.transpose(pred_boxes, (0, 2, 1)).astype(jnp.float32)      # [B, 4, Q]
    onehot = jax.nn.one_hot(labels, C, dtype=jnp.float32)                   # [B, G, C]
    inv = jnp.broadcast_to((1.0 / image_size_xyxy.astype(jnp.float32))[:, None, :],
                           (B, G, 4))                                       # [B, G, 4]
    side = jnp.concatenate([gt_xyxy.astype(jnp.float32), onehot, inv], axis=-1)

    packed = matcher_costs(logits_t, boxes_t, side,
                           alpha=alpha, gamma=gamma, w_class=w_class,
                           w_bbox=w_bbox, w_giou=w_giou, bblk=bblk)          # [B, 2G, Q]
    cost_gq = packed[:, :G, :]
    iou_gq = packed[:, G:, :]

    match_fn = jax.vmap(functools.partial(dynamic_k_matching, ota_k=ota_k))
    return match_fn(cost_gq, iou_gq)


_N_TC = None


def _tensorcores_per_chip():
    """2 on v7x (keep >=2 grid steps so both cores get work), 1 on v5e/v6e."""
    global _N_TC
    if _N_TC is None:
        try:
            kind = jax.devices()[0].device_kind.lower()
            _N_TC = 2 if "v7" in kind else 1
        except Exception:  # pragma: no cover
            _N_TC = 1
    return _N_TC


def hungarian_matcher_forward(outputs, targets, cfg):
    """Array-based equivalent of HungarianMatcherDynamicK.forward (disentangled == 0)."""
    pred_logits = outputs["pred_logits"]          # [B, Q, C]
    pred_boxes = outputs["pred_boxes"]            # [B, Q, 4]
    labels = targets["labels"]                    # [B, G]
    gt_xyxy = targets["boxes_xyxy"]               # [B, G, 4]
    imgsz = targets["image_size_xyxy"]            # [B, 4]
    # image_size_xyxy_tgt is image_size repeated per gt in the reference pipeline,
    # so the kernel normalizes gt with the per-image size and we do not ship it.
    # TODO(synk): empty-target batches (num_insts == 0) and the disentangled==1
    # softmax*objectness branch are not exercised here.

    B = pred_logits.shape[0]
    n_tc = _tensorcores_per_chip()
    # collapse the batch into one grid step on single-TC chips; keep 2 steps on v7x
    bblk = B // 2 if (n_tc >= 2 and B >= 2 and B % 2 == 0) else B

    (sel_b, gt_idx_b), mqid_b = _matcher_pipeline(
        pred_logits, pred_boxes, labels, gt_xyxy, imgsz,
        alpha=float(cfg["alpha"]), gamma=float(cfg["gamma"]),
        w_class=float(cfg["cost_class"]), w_bbox=float(cfg["cost_bbox"]),
        w_giou=float(cfg["cost_giou"]), ota_k=int(cfg["ota_k"]), bblk=int(bblk))

    indices = [(sel_b[b], gt_idx_b[b]) for b in range(B)]
    matched_ids = [mqid_b[b] for b in range(B)]
    # TODO(synk): open-world NC branch (forward_k top-k, unknown labels/targets) is
    # host-side Python-list bookkeeping; not ported to the kernel.
    return indices, matched_ids


def _make_boxes(key, shape_prefix, W, H):
    k1, k2, k3, k4 = jax.random.split(key, 4)
    cx = jax.random.uniform(k1, shape_prefix, minval=0.15 * W, maxval=0.85 * W)
    cy = jax.random.uniform(k2, shape_prefix, minval=0.15 * H, maxval=0.85 * H)
    w = jax.random.uniform(k3, shape_prefix, minval=20.0, maxval=120.0)
    h = jax.random.uniform(k4, shape_prefix, minval=20.0, maxval=120.0)
    return jnp.stack([cx - 0.5 * w, cy - 0.5 * h, cx + 0.5 * w, cy + 0.5 * h], axis=-1)


if __name__ == "__main__":
    B, Q, C, G = 2, 128, 16, 8
    W, H = 640.0, 480.0
    cfg = dict(cost_class=2.0, cost_bbox=5.0, cost_giou=2.0,
               alpha=0.25, gamma=2.0, ota_k=5)

    key = jax.random.PRNGKey(0)
    k_logit, k_pbox, k_gbox, k_lab = jax.random.split(key, 4)

    pred_logits = jax.random.normal(k_logit, (B, Q, C), dtype=jnp.float32)
    pred_boxes = _make_boxes(k_pbox, (B, Q), W, H).astype(jnp.float32)
    gt_boxes_xyxy = _make_boxes(k_gbox, (B, G), W, H).astype(jnp.float32)
    labels = jax.random.randint(k_lab, (B, G), 0, C, dtype=jnp.int32)

    image_size_xyxy = jnp.tile(jnp.array([[W, H, W, H]], dtype=jnp.float32), (B, 1))   # [B, 4]
    image_size_xyxy_tgt = jnp.tile(image_size_xyxy[:, None, :], (1, G, 1))             # [B, G, 4]

    outputs = {"pred_logits": pred_logits, "pred_boxes": pred_boxes}
    targets = {"labels": labels, "boxes_xyxy": gt_boxes_xyxy,
               "image_size_xyxy": image_size_xyxy,
               "image_size_xyxy_tgt": image_size_xyxy_tgt}

    indices, matched_ids = hungarian_matcher_forward(outputs, targets, cfg)

    for (sel, gt_idx), mqid in zip(indices, matched_ids):
        jax.block_until_ready(sel)
        jax.block_until_ready(gt_idx)
        jax.block_until_ready(mqid)

    print("KERNEL_OK")
</pallas_src>

<mosaic_0001>
module attributes {stable_mosaic.version = 11 : i64} {
  func.func @_matcher_cost_kernel(%arg0: i32, %arg1: memref<2x16x128xf32, #tpu.memory_space<vmem>>, %arg2: memref<2x4x128xf32, #tpu.memory_space<vmem>>, %arg3: memref<2x8x24xf32, #tpu.memory_space<vmem>>, %arg4: memref<2x16x128xf32, #tpu.memory_space<vmem>>) attributes {dimension_semantics = [#tpu.dimension_semantics<parallel>], iteration_bounds = array<i64: 1>, scalar_prefetch = 0 : i64, scratch_operands = 0 : i64, tpu.core_type = #tpu.core_type<tc>, window_params = [{transform_indices = @transform_0, window_bounds = array<i64: 2, 16, 128>}, {transform_indices = @transform_1, window_bounds = array<i64: 2, 4, 128>}, {transform_indices = @transform_2, window_bounds = array<i64: 2, 8, 24>}, {transform_indices = @transform_3, window_bounds = array<i64: 2, 16, 128>}]} {
    %c0 = arith.constant 0 : index
    %c0_0 = arith.constant 0 : index
    %c0_1 = arith.constant 0 : index
    %0 = vector.load %arg1[%c0, %c0_0, %c0_1] : memref<2x16x128xf32, #tpu.memory_space<vmem>>, vector<1x16x128xf32>
    %1 = vector.shape_cast %0 : vector<1x16x128xf32> to vector<16x128xf32>
    %c0_2 = arith.constant 0 : index
    %c0_3 = arith.constant 0 : index
    %c0_4 = arith.constant 0 : index
    %2 = vector.load %arg2[%c0_2, %c0_3, %c0_4] : memref<2x4x128xf32, #tpu.memory_space<vmem>>, vector<1x4x128xf32>
    %3 = vector.shape_cast %2 : vector<1x4x128xf32> to vector<4x128xf32>
    %c0_5 = arith.constant 0 : index
    %c0_6 = arith.constant 0 : index
    %c0_7 = arith.constant 0 : index
    %4 = vector.load %arg3[%c0_5, %c0_6, %c0_7] : memref<2x8x24xf32, #tpu.memory_space<vmem>>, vector<1x8x24xf32>
    %5 = vector.shape_cast %4 : vector<1x8x24xf32> to vector<8x24xf32>
    %6 = vector.extract_strided_slice %5 {offsets = [0, 0], sizes = [8, 4], strides = [1, 1]} : vector<8x24xf32> to vector<8x4xf32>
    %7 = vector.extract_strided_slice %5 {offsets = [0, 4], sizes = [8, 16], strides = [1, 1]} : vector<8x24xf32> to vector<8x16xf32>
    %8 = vector.extract_strided_slice %5 {offsets = [0, 20], sizes = [8, 4], strides = [1, 1]} : vector<8x24xf32> to vector<8x4xf32>
    %9 = arith.truncf %7 : vector<8x16xf32> to vector<8x16xbf16>
    %10 = arith.truncf %1 : vector<16x128xf32> to vector<16x128xbf16>
    %cst = arith.constant dense<0.000000e+00> : vector<8x128xf32>
    %11 = tpu.matmul %9, %10, %cst {dimension_numbers = #tpu.dot_dimension_numbers<[1], [0], [0], [1], [0, 0, 1, 1], [], []>} : vector<8x16xbf16>, vector<16x128xbf16>, vector<8x128xf32> -> vector<8x128xf32>
    %12 = arith.negf %11 : vector<8x128xf32>
    %13 = math.exp %12 : vector<8x128xf32>
    %cst_8 = arith.constant 1.000000e+00 : f32
    %14 = vector.broadcast %cst_8 : f32 to vector<8x128xf32>
    %15 = arith.addf %14, %13 : vector<8x128xf32>
    %16 = arith.divf %14, %15 : vector<8x128xf32>
    %17 = arith.mulf %16, %16 : vector<8x128xf32>
    %cst_9 = arith.constant 7.500000e-01 : f32
    %18 = vector.broadcast %cst_9 : f32 to vector<8x128xf32>
    %19 = arith.mulf %18, %17 : vector<8x128xf32>
    %cst_10 = arith.constant 1.000000e+00 : f32
    %20 = vector.broadcast %cst_10 : f32 to vector<8x128xf32>
    %21 = arith.subf %20, %16 : vector<8x128xf32>
    %cst_11 = arith.constant 9.99999993E-9 : f32
    %22 = vector.broadcast %cst_11 : f32 to vector<8x128xf32>
    %23 = arith.addf %21, %22 : vector<8x128xf32>
    %24 = math.log %23 : vector<8x128xf32>
    %cst_12 = arith.constant 0.000000e+00 : f32
    %25 = vector.broadcast %cst_12 : f32 to vector<8x128xf32>
    %26 = arith.subf %25, %24 : vector<8x128xf32>
    %27 = arith.mulf %19, %26 : vector<8x128xf32>
    %cst_13 = arith.constant 1.000000e+00 : f32
    %28 = vector.broadcast %cst_13 : f32 to vector<8x128xf32>
    %29 = arith.subf %28, %16 : vector<8x128xf32>
    %30 = arith.mulf %29, %29 : vector<8x128xf32>
    %cst_14 = arith.constant 2.500000e-01 : f32
    %31 = vector.broadcast %cst_14 : f32 to vector<8x128xf32>
    %32 = arith.mulf %31, %30 : vector<8x128xf32>
    %cst_15 = arith.constant 9.99999993E-9 : f32
    %33 = vector.broadcast %cst_15 : f32 to vector<8x128xf32>
    %34 = arith.addf %16, %33 : vector<8x128xf32>
    %35 = math.log %34 : vector<8x128xf32>
    %cst_16 = arith.constant 0.000000e+00 : f32
    %36 = vector.broadcast %cst_16 : f32 to vector<8x128xf32>
    %37 = arith.subf %36, %35 : vector<8x128xf32>
    %38 = arith.mulf %32, %37 : vector<8x128xf32>
    %39 = arith.subf %38, %27 : vector<8x128xf32>
    %40 = vector.extract_strided_slice %3 {offsets = [0, 0], sizes = [1, 128], strides = [1, 1]} : vector<4x128xf32> to vector<1x128xf32>
    %41 = vector.extract_strided_slice %3 {offsets = [1, 0], sizes = [1, 128], strides = [1, 1]} : vector<4x128xf32> to vector<1x128xf32>
    %42 = vector.extract_strided_slice %3 {offsets = [2, 0], sizes = [1, 128], strides = [1, 1]} : vector<4x128xf32> to vector<1x128xf32>
    %43 = vector.extract_strided_slice %3 {offsets = [3, 0], sizes = [1, 128], strides = [1, 1]} : vector<4x128xf32> to vector<1x128xf32>
    %44 = arith.addf %40, %42 : vector<1x128xf32>
    %cst_17 = arith.constant 5.000000e-01 : f32
    %45 = vector.broadcast %cst_17 : f32 to vector<1x128xf32>
    %46 = arith.mulf %45, %44 : vector<1x128xf32>
    %47 = arith.addf %41, %43 : vector<1x128xf32>
    %cst_18 = arith.constant 5.000000e-01 : f32
    %48 = vector.broadcast %cst_18 : f32 to vector<1x128xf32>
    %49 = arith.mulf %48, %47 : vector<1x128xf32>
    %50 = vector.extract_strided_slice %6 {offsets = [0, 0], sizes = [8, 1], strides = [1, 1]} : vector<8x4xf32> to vector<8x1xf32>
    %51 = vector.extract_strided_slice %6 {offsets = [0, 1], sizes = [8, 1], strides = [1, 1]} : vector<8x4xf32> to vector<8x1xf32>
    %52 = vector.extract_strided_slice %6 {offsets = [0, 2], sizes = [8, 1], strides = [1, 1]} : vector<8x4xf32> to vector<8x1xf32>
    %53 = vector.extract_strided_slice %6 {offsets = [0, 3], sizes = [8, 1], strides = [1, 1]} : vector<8x4xf32> to vector<8x1xf32>
    %54 = arith.addf %50, %52 : vector<8x1xf32>
    %cst_19 = arith.constant 5.000000e-01 : f32
    %55 = vector.broadcast %cst_19 : f32 to vector<8x1xf32>
    %56 = arith.mulf %55, %54 : vector<8x1xf32>
    %57 = arith.addf %51, %53 : vector<8x1xf32>
    %cst_20 = arith.constant 5.000000e-01 : f32
    %58 = vector.broadcast %cst_20 : f32 to vector<8x1xf32>
    %59 = arith.mulf %58, %57 : vector<8x1xf32>
    %60 = arith.subf %52, %50 : vector<8x1xf32>
    %61 = arith.subf %53, %51 : vector<8x1xf32>
    %62 = vector.broadcast %46 : vector<1x128xf32> to vector<8x128xf32>
    %63 = vector.broadcast %50 : vector<8x1xf32> to vector<8x128xf32>
    %64 = arith.cmpf ogt, %62, %63 : vector<8x128xf32>
    %65 = vector.broadcast %46 : vector<1x128xf32> to vector<8x128xf32>
    %66 = vector.broadcast %52 : vector<8x1xf32> to vector<8x128xf32>
    %67 = arith.cmpf olt, %65, %66 : vector<8x128xf32>
    %68 = arith.andi %64, %67 : vector<8x128xi1>
    %69 = vector.broadcast %49 : vector<1x128xf32> to vector<8x128xf32>
    %70 = vector.broadcast %51 : vector<8x1xf32> to vector<8x128xf32>
    %71 = arith.cmpf ogt, %69, %70 : vector<8x128xf32>
    %72 = arith.andi %68, %71 : vector<8x128xi1>
    %73 = vector.broadcast %49 : vector<1x128xf32> to vector<8x128xf32>
    %74 = vector.broadcast %53 : vector<8x1xf32> to vector<8x128xf32>
    %75 = arith.cmpf olt, %73, %74 : vector<8x128xf32>
    %76 = arith.andi %72, %75 : vector<8x128xi1>
    %cst_21 = arith.constant 2.500000e+00 : f32
    %77 = vector.broadcast %cst_21 : f32 to vector<8x1xf32>
    %78 = arith.mulf %77, %60 : vector<8x1xf32>
    %79 = arith.subf %56, %78 : vector<8x1xf32>
    %80 = vector.broadcast %46 : vector<1x128xf32> to vector<8x128xf32>
    %81 = vector.broadcast %79 : vector<8x1xf32> to vector<8x128xf32>
    %82 = arith.cmpf ogt, %80, %81 : vector<8x128xf32>
    %cst_22 = arith.constant 2.500000e+00 : f32
    %83 = vector.broadcast %cst_22 : f32 to vector<8x1xf32>
    %84 = arith.mulf %83, %60 : vector<8x1xf32>
    %85 = arith.addf %56, %84 : vector<8x1xf32>
    %86 = vector.broadcast %46 : vector<1x128xf32> to vector<8x128xf32>
    %87 = vector.broadcast %85 : vector<8x1xf32> to vector<8x128xf32>
    %88 = arith.cmpf olt, %86, %87 : vector<8x128xf32>
    %89 = arith.andi %82, %88 : vector<8x128xi1>
    %cst_23 = arith.constant 2.500000e+00 : f32
    %90 = vector.broadcast %cst_23 : f32 to vector<8x1xf32>
    %91 = arith.mulf %90, %61 : vector<8x1xf32>
    %92 = arith.subf %59, %91 : vector<8x1xf32>
    %93 = vector.broadcast %49 : vector<1x128xf32> to vector<8x128xf32>
    %94 = vector.broadcast %92 : vector<8x1xf32> to vector<8x128xf32>
    %95 = arith.cmpf ogt, %93, %94 : vector<8x128xf32>
    %96 = arith.andi %89, %95 : vector<8x128xi1>
    %cst_24 = arith.constant 2.500000e+00 : f32
    %97 = vector.broadcast %cst_24 : f32 to vector<8x1xf32>
    %98 = arith.mulf %97, %61 : vector<8x1xf32>
    %99 = arith.addf %59, %98 : vector<8x1xf32>
    %100 = vector.broadcast %49 : vector<1x128xf32> to vector<8x128xf32>
    %101 = vector.broadcast %99 : vector<8x1xf32> to vector<8x128xf32>
    %102 = arith.cmpf olt, %100, %101 : vector<8x128xf32>
    %103 = arith.andi %96, %102 : vector<8x128xi1>
    %104 = arith.extui %76 : vector<8x128xi1> to vector<8x128xi32>
    %105 = arith.sitofp %104 : vector<8x128xi32> to vector<8x128xf32>
    %cst_25 = arith.constant dense<0xFF800000> : vector<128xf32>
    %106 = vector.multi_reduction <maximumf>, %105, %cst_25 [0] : vector<8x128xf32> to vector<128xf32>
    %107 = vector.shape_cast %106 : vector<128xf32> to vector<1x128xf32>
    %108 = arith.extui %103 : vector<8x128xi1> to vector<8x128xi32>
    %109 = arith.sitofp %108 : vector<8x128xi32> to vector<8x128xf32>
    %cst_26 = arith.constant dense<0xFF800000> : vector<128xf32>
    %110 = vector.multi_reduction <maximumf>, %109, %cst_26 [0] : vector<8x128xf32> to vector<128xf32>
    %111 = vector.shape_cast %110 : vector<128xf32> to vector<1x128xf32>
    %112 = arith.addf %107, %111 : vector<1x128xf32>
    %cst_27 = arith.constant 0.000000e+00 : f32
    %113 = vector.broadcast %cst_27 : f32 to vector<1x128xf32>
    %114 = arith.cmpf ogt, %112, %113 : vector<1x128xf32>
    %115 = arith.andi %76, %103 : vector<8x128xi1>
    %116 = arith.subf %42, %40 : vector<1x128xf32>
    %117 = arith.subf %43, %41 : vector<1x128xf32>
    %118 = arith.mulf %116, %117 : vector<1x128xf32>
    %119 = arith.subf %52, %50 : vector<8x1xf32>
    %120 = arith.subf %53, %51 : vector<8x1xf32>
    %121 = arith.mulf %119, %120 : vector<8x1xf32>
    %122 = vector.broadcast %40 : vector<1x128xf32> to vector<8x128xf32>
    %123 = vector.broadcast %50 : vector<8x1xf32> to vector<8x128xf32>
    %124 = arith.maximumf %122, %123 : vector<8x128xf32>
    %125 = vector.broadcast %41 : vector<1x128xf32> to vector<8x128xf32>
    %126 = vector.broadcast %51 : vector<8x1xf32> to vector<8x128xf32>
    %127 = arith.maximumf %125, %126 : vector<8x128xf32>
    %128 = vector.broadcast %42 : vector<1x128xf32> to vector<8x128xf32>
    %129 = vector.broadcast %52 : vector<8x1xf32> to vector<8x128xf32>
    %130 = arith.minimumf %128, %129 : vector<8x128xf32>
    %131 = vector.broadcast %43 : vector<1x128xf32> to vector<8x128xf32>
    %132 = vector.broadcast %53 : vector<8x1xf32> to vector<8x128xf32>
    %133 = arith.minimumf %131, %132 : vector<8x128xf32>
    %134 = arith.subf %130, %124 : vector<8x128xf32>
    %cst_28 = arith.constant 0.000000e+00 : f32
    %135 = vector.broadcast %cst_28 : f32 to vector<8x128xf32>
    %136 = arith.maximumf %134, %135 : vector<8x128xf32>
    %137 = arith.subf %133, %127 : vector<8x128xf32>
    %cst_29 = arith.constant 0.000000e+00 : f32
    %138 = vector.broadcast %cst_29 : f32 to vector<8x128xf32>
    %139 = arith.maximumf %137, %138 : vector<8x128xf32>
    %140 = arith.mulf %136, %139 : vector<8x128xf32>
    %141 = vector.broadcast %118 : vector<1x128xf32> to vector<8x128xf32>
    %142 = vector.broadcast %121 : vector<8x1xf32> to vector<8x128xf32>
    %143 = arith.addf %141, %142 : vector<8x128xf32>
    %144 = arith.subf %143, %140 : vector<8x128xf32>
    %145 = arith.divf %140, %144 : vector<8x128xf32>
    %146 = vector.broadcast %40 : vector<1x128xf32> to vector<8x128xf32>
    %147 = vector.broadcast %50 : vector<8x1xf32> to vector<8x128xf32>
    %148 = arith.minimumf %146, %147 : vector<8x128xf32>
    %149 = vector.broadcast %41 : vector<1x128xf32> to vector<8x128xf32>
    %150 = vector.broadcast %51 : vector<8x1xf32> to vector<8x128xf32>
    %151 = arith.minimumf %149, %150 : vector<8x128xf32>
    %152 = vector.broadcast %42 : vector<1x128xf32> to vector<8x128xf32>
    %153 = vector.broadcast %52 : vector<8x1xf32> to vector<8x128xf32>
    %154 = arith.maximumf %152, %153 : vector<8x128xf32>
    %155 = vector.broadcast %43 : vector<1x128xf32> to vector<8x128xf32>
    %156 = vector.broadcast %53 : vector<8x1xf32> to vector<8x128xf32>
    %157 = arith.maximumf %155, %156 : vector<8x128xf32>
    %158 = arith.subf %154, %148 : vector<8x128xf32>
    %cst_30 = arith.constant 0.000000e+00 : f32
    %159 = vector.broadcast %cst_30 : f32 to vector<8x128xf32>
    %160 = arith.maximumf %158, %159 : vector<8x128xf32>
    %161 = arith.subf %157, %151 : vector<8x128xf32>
    %cst_31 = arith.constant 0.000000e+00 : f32
    %162 = vector.broadcast %cst_31 : f32 to vector<8x128xf32>
    %163 = arith.maximumf %161, %162 : vector<8x128xf32>
    %164 = arith.mulf %160, %163 : vector<8x128xf32>
    %165 = arith.subf %164, %144 : vector<8x128xf32>
    %166 = arith.divf %165, %164 : vector<8x128xf32>
    %167 = arith.subf %145, %166 : vector<8x128xf32>
    %168 = vector.broadcast %40 : vector<1x128xf32> to vector<8x128xf32>
    %169 = vector.broadcast %50 : vector<8x1xf32> to vector<8x128xf32>
    %170 = arith.subf %168, %169 : vector<8x128xf32>
    %171 = math.absf %170 : vector<8x128xf32>
    %172 = vector.extract_strided_slice %8 {offsets = [0, 0], sizes = [8, 1], strides = [1, 1]} : vector<8x4xf32> to vector<8x1xf32>
    %173 = vector.broadcast %172 : vector<8x1xf32> to vector<8x128xf32>
    %174 = arith.mulf %171, %173 : vector<8x128xf32>
    %175 = vector.broadcast %41 : vector<1x128xf32> to vector<8x128xf32>
    %176 = vector.broadcast %51 : vector<8x1xf32> to vector<8x128xf32>
    %177 = arith.subf %175, %176 : vector<8x128xf32>
    %178 = math.absf %177 : vector<8x128xf32>
    %179 = vector.extract_strided_slice %8 {offsets = [0, 1], sizes = [8, 1], strides = [1, 1]} : vector<8x4xf32> to vector<8x1xf32>
    %180 = vector.broadcast %179 : vector<8x1xf32> to vector<8x128xf32>
    %181 = arith.mulf %178, %180 : vector<8x128xf32>
    %182 = arith.addf %174, %181 : vector<8x128xf32>
    %183 = vector.broadcast %42 : vector<1x128xf32> to vector<8x128xf32>
    %184 = vector.broadcast %52 : vector<8x1xf32> to vector<8x128xf32>
    %185 = arith.subf %183, %184 : vector<8x128xf32>
    %186 = math.absf %185 : vector<8x128xf32>
    %187 = vector.extract_strided_slice %8 {offsets = [0, 2], sizes = [8, 1], strides = [1, 1]} : vector<8x4xf32> to vector<8x1xf32>
    %188 = vector.broadcast %187 : vector<8x1xf32> to vector<8x128xf32>
    %189 = arith.mulf %186, %188 : vector<8x128xf32>
    %190 = arith.addf %182, %189 : vector<8x128xf32>
    %191 = vector.broadcast %43 : vector<1x128xf32> to vector<8x128xf32>
    %192 = vector.broadcast %53 : vector<8x1xf32> to vector<8x128xf32>
    %193 = arith.subf %191, %192 : vector<8x128xf32>
    %194 = math.absf %193 : vector<8x128xf32>
    %195 = vector.extract_strided_slice %8 {offsets = [0, 3], sizes = [8, 1], strides = [1, 1]} : vector<8x4xf32> to vector<8x1xf32>
    %196 = vector.broadcast %195 : vector<8x1xf32> to vector<8x128xf32>
    %197 = arith.mulf %194, %196 : vector<8x128xf32>
    %198 = arith.addf %190, %197 : vector<8x128xf32>
    %cst_32 = arith.constant 5.000000e+00 : f32
    %199 = vector.broadcast %cst_32 : f32 to vector<8x128xf32>
    %200 = arith.mulf %199, %198 : vector<8x128xf32>
    %cst_33 = arith.constant 2.000000e+00 : f32
    %201 = vector.broadcast %cst_33 : f32 to vector<8x128xf32>
    %202 = arith.mulf %201, %39 : vector<8x128xf32>
    %203 = arith.addf %200, %202 : vector<8x128xf32>
    %cst_34 = arith.constant 2.000000e+00 : f32
    %204 = vector.broadcast %cst_34 : f32 to vector<8x128xf32>
    %205 = arith.mulf %204, %167 : vector<8x128xf32>
    %206 = arith.subf %203, %205 : vector<8x128xf32>
    %cst_35 = arith.constant 0.000000e+00 : f32
    %cst_36 = arith.constant 1.000000e+02 : f32
    %207 = vector.broadcast %cst_35 : f32 to vector<8x128xf32>
    %208 = vector.broadcast %cst_36 : f32 to vector<8x128xf32>
    %209 = arith.select %115, %207, %208 : vector<8x128xi1>, vector<8x128xf32>
    %210 = arith.addf %206, %209 : vector<8x128xf32>
    %cst_37 = arith.constant 0.000000e+00 : f32
    %cst_38 = arith.constant 1.000000e+04 : f32
    %211 = vector.broadcast %cst_37 : f32 to vector<1x128xf32>
    %212 = vector.broadcast %cst_38 : f32 to vector<1x128xf32>
    %213 = arith.select %114, %211, %212 : vector<1x128xi1>, vector<1x128xf32>
    %214 = vector.broadcast %213 : vector<1x128xf32> to vector<8x128xf32>
    %215 = arith.addf %210, %214 : vector<8x128xf32>
    %216 = tpu.concatenate %215, %145 in 0 : vector<8x128xf32>, vector<8x128xf32> -> vector<16x128xf32>
    %c0_39 = arith.constant 0 : index
    %c0_40 = arith.constant 0 : index
    %c0_41 = arith.constant 0 : index
    %217 = vector.load %arg4[%c0_39, %c0_40, %c0_41] : memref<2x16x128xf32, #tpu.memory_space<vmem>>, vector<1x16x128xf32>
    %218 = vector.shape_cast %217 : vector<1x16x128xf32> to vector<16x128xf32>
    %219 = vector.shape_cast %216 : vector<16x128xf32> to vector<1x16x128xf32>
    tpu.vector_store %arg4[%c0_39, %c0_40, %c0_41], %219 {strides = array<i32>} : memref<2x16x128xf32, #tpu.memory_space<vmem>>, vector<1x16x128xf32>,
    %c1 = arith.constant 1 : index
    %c0_42 = arith.constant 0 : index
    %c0_43 = arith.constant 0 : index
    %220 = vector.load %arg1[%c1, %c0_42, %c0_43] : memref<2x16x128xf32, #tpu.memory_space<vmem>>, vector<1x16x128xf32>
    %221 = vector.shape_cast %220 : vector<1x16x128xf32> to vector<16x128xf32>
    %c1_44 = arith.constant 1 : index
    %c0_45 = arith.constant 0 : index
    %c0_46 = arith.constant 0 : index
    %222 = vector.load %arg2[%c1_44, %c0_45, %c0_46] : memref<2x4x128xf32, #tpu.memory_space<vmem>>, vector<1x4x128xf32>
    %223 = vector.shape_cast %222 : vector<1x4x128xf32> to vector<4x128xf32>
    %c1_47 = arith.constant 1 : index
    %c0_48 = arith.constant 0 : index
    %c0_49 = arith.constant 0 : index
    %224 = vector.load %arg3[%c1_47, %c0_48, %c0_49] : memref<2x8x24xf32, #tpu.memory_space<vmem>>, vector<1x8x24xf32>
    %225 = vector.shape_cast %224 : vector<1x8x24xf32> to vector<8x24xf32>
    %226 = vector.extract_strided_slice %225 {offsets = [0, 0], sizes = [8, 4], strides = [1, 1]} : vector<8x24xf32> to vector<8x4xf32>
    %227 = vector.extract_strided_slice %225 {offsets = [0, 4], sizes = [8, 16], strides = [1, 1]} : vector<8x24xf32> to vector<8x16xf32>
    %228 = vector.extract_strided_slice %225 {offsets = [0, 20], sizes = [8, 4], strides = [1, 1]} : vector<8x24xf32> to vector<8x4xf32>
    %229 = arith.truncf %227 : vector<8x16xf32> to vector<8x16xbf16>
    %230 = arith.truncf %221 : vector<16x128xf32> to vector<16x128xbf16>
    %cst_50 = arith.constant dense<0.000000e+00> : vector<8x128xf32>
    %231 = tpu.matmul %229, %230, %cst_50 {dimension_numbers = #tpu.dot_dimension_numbers<[1], [0], [0], [1], [0, 0, 1, 1], [], []>} : vector<8x16xbf16>, vector<16x128xbf16>, vector<8x128xf32> -> vector<8x128xf32>
    %232 = arith.negf %231 : vector<8x128xf32>
    %233 = math.exp %232 : vector<8x128xf32>
    %cst_51 = arith.constant 1.000000e+00 : f32
    %234 = vector.broadcast %cst_51 : f32 to vector<8x128xf32>
    %235 = arith.addf %234, %233 : vector<8x128xf32>
    %236 = arith.divf %234, %235 : vector<8x128xf32>
    %237 = arith.mulf %236, %236 : vector<8x128xf32>
    %cst_52 = arith.constant 7.500000e-01 : f32
    %238 = vector.broadcast %cst_52 : f32 to vector<8x128xf32>
    %239 = arith.mulf %238, %237 : vector<8x128xf32>
    %cst_53 = arith.constant 1.000000e+00 : f32
    %240 = vector.broadcast %cst_53 : f32 to vector<8x128xf32>
    %241 = arith.subf %240, %236 : vector<8x128xf32>
    %cst_54 = arith.constant 9.99999993E-9 : f32
    %242 = vector.broadcast %cst_54 : f32 to vector<8x128xf32>
    %243 = arith.addf %241, %242 : vector<8x128xf32>
    %244 = math.log %243 : vector<8x128xf32>
    %cst_55 = arith.constant 0.000000e+00 : f32
    %245 = vector.broadcast %cst_55 : f32 to vector<8x128xf32>
    %246 = arith.subf %245, %244 : vector<8x128xf32>
    %247 = arith.mulf %239, %246 : vector<8x128xf32>
    %cst_56 = arith.constant 1.000000e+00 : f32
    %248 = vector.broadcast %cst_56 : f32 to vector<8x128xf32>
    %249 = arith.subf %248, %236 : vector<8x128xf32>
    %250 = arith.mulf %249, %249 : vector<8x128xf32>
    %cst_57 = arith.constant 2.500000e-01 : f32
    %251 = vector.broadcast %cst_57 : f32 to vector<8x128xf32>
    %252 = arith.mulf %251, %250 : vector<8x128xf32>
    %cst_58 = arith.constant 9.99999993E-9 : f32
    %253 = vector.broadcast %cst_58 : f32 to vector<8x128xf32>
    %254 = arith.addf %236, %253 : vector<8x128xf32>
    %255 = math.log %254 : vector<8x128xf32>
    %cst_59 = arith.constant 0.000000e+00 : f32
    %256 = vector.broadcast %cst_59 : f32 to vector<8x128xf32>
    %257 = arith.subf %256, %255 : vector<8x128xf32>
    %258 = arith.mulf %252, %257 : vector<8x128xf32>
    %259 = arith.subf %258, %247 : vector<8x128xf32>
    %260 = vector.extract_strided_slice %223 {offsets = [0, 0], sizes = [1, 128], strides = [1, 1]} : vector<4x128xf32> to vector<1x128xf32>
    %261 = vector.extract_strided_slice %223 {offsets = [1, 0], sizes = [1, 128], strides = [1, 1]} : vector<4x128xf32> to vector<1x128xf32>
    %262 = vector.extract_strided_slice %223 {offsets = [2, 0], sizes = [1, 128], strides = [1, 1]} : vector<4x128xf32> to vector<1x128xf32>
    %263 = vector.extract_strided_slice %223 {offsets = [3, 0], sizes = [1, 128], strides = [1, 1]} : vector<4x128xf32> to vector<1x128xf32>
    %264 = arith.addf %260, %262 : vector<1x128xf32>
    %cst_60 = arith.constant 5.000000e-01 : f32
    %265 = vector.broadcast %cst_60 : f32 to vector<1x128xf32>
    %266 = arith.mulf %265, %264 : vector<1x128xf32>
    %267 = arith.addf %261, %263 : vector<1x128xf32>
    %cst_61 = arith.constant 5.000000e-01 : f32
    %268 = vector.broadcast %cst_61 : f32 to vector<1x128xf32>
    %269 = arith.mulf %268, %267 : vector<1x128xf32>
    %270 = vector.extract_strided_slice %226 {offsets = [0, 0], sizes = [8, 1], strides = [1, 1]} : vector<8x4xf32> to vector<8x1xf32>
    %271 = vector.extract_strided_slice %226 {offsets = [0, 1], sizes = [8, 1], strides = [1, 1]} : vector<8x4xf32> to vector<8x1xf32>
    %272 = vector.extract_strided_slice %226 {offsets = [0, 2], sizes = [8, 1], strides = [1, 1]} : vector<8x4xf32> to vector<8x1xf32>
    %273 = vector.extract_strided_slice %226 {offsets = [0, 3], sizes = [8, 1], strides = [1, 1]} : vector<8x4xf32> to vector<8x1xf32>
    %274 = arith.addf %270, %272 : vector<8x1xf32>
    %cst_62 = arith.constant 5.000000e-01 : f32
    %275 = vector.broadcast %cst_62 : f32 to vector<8x1xf32>
    %276 = arith.mulf %275, %274 : vector<8x1xf32>
    %277 = arith.addf %271, %273 : vector<8x1xf32>
    %cst_63 = arith.constant 5.000000e-01 : f32
    %278 = vector.broadcast %cst_63 : f32 to vector<8x1xf32>
    %279 = arith.mulf %278, %277 : vector<8x1xf32>
    %280 = arith.subf %272, %270 : vector<8x1xf32>
    %281 = arith.subf %273, %271 : vector<8x1xf32>
    %282 = vector.broadcast %266 : vector<1x128xf32> to vector<8x128xf32>
    %283 = vector.broadcast %270 : vector<8x1xf32> to vector<8x128xf32>
    %284 = arith.cmpf ogt, %282, %283 : vector<8x128xf32>
    %285 = vector.broadcast %266 : vector<1x128xf32> to vector<8x128xf32>
    %286 = vector.broadcast %272 : vector<8x1xf32> to vector<8x128xf32>
    %287 = arith.cmpf olt, %285, %286 : vector<8x128xf32>
    %288 = arith.andi %284, %287 : vector<8x128xi1>
    %289 = vector.broadcast %269 : vector<1x128xf32> to vector<8x128xf32>
    %290 = vector.broadcast %271 : vector<8x1xf32> to vector<8x128xf32>
    %291 = arith.cmpf ogt, %289, %290 : vector<8x128xf32>
    %292 = arith.andi %288, %291 : vector<8x128xi1>
    %293 = vector.broadcast %269 : vector<1x128xf32> to vector<8x128xf32>
    %294 = vector.broadcast %273 : vector<8x1xf32> to vector<8x128xf32>
    %295 = arith.cmpf olt, %293, %294 : vector<8x128xf32>
    %296 = arith.andi %292, %295 : vector<8x128xi1>
    %cst_64 = arith.constant 2.500000e+00 : f32
    %297 = vector.broadcast %cst_64 : f32 to vector<8x1xf32>
    %298 = arith.mulf %297, %280 : vector<8x1xf32>
    %299 = arith.subf %276, %298 : vector<8x1xf32>
    %300 = vector.broadcast %266 : vector<1x128xf32> to vector<8x128xf32>
    %301 = vector.broadcast %299 : vector<8x1xf32> to vector<8x128xf32>
    %302 = arith.cmpf ogt, %300, %301 : vector<8x128xf32>
    %cst_65 = arith.constant 2.500000e+00 : f32
    %303 = vector.broadcast %cst_65 : f32 to vector<8x1xf32>
    %304 = arith.mulf %303, %280 : vector<8x1xf32>
    %305 = arith.addf %276, %304 : vector<8x1xf32>
    %306 = vector.broadcast %266 : vector<1x128xf32> to vector<8x128xf32>
    %307 = vector.broadcast %305 : vector<8x1xf32> to vector<8x128xf32>
    %308 = arith.cmpf olt, %306, %307 : vector<8x128xf32>
    %309 = arith.andi %302, %308 : vector<8x128xi1>
    %cst_66 = arith.constant 2.500000e+00 : f32
    %310 = vector.broadcast %cst_66 : f32 to vector<8x1xf32>
    %311 = arith.mulf %310, %281 : vector<8x1xf32>
    %312 = arith.subf %279, %311 : vector<8x1xf32>
    %313 = vector.broadcast %269 : vector<1x128xf32> to vector<8x128xf32>
    %314 = vector.broadcast %312 : vector<8x1xf32> to vector<8x128xf32>
    %315 = arith.cmpf ogt, %313, %314 : vector<8x128xf32>
    %316 = arith.andi %309, %315 : vector<8x128xi1>
    %cst_67 = arith.constant 2.500000e+00 : f32
    %317 = vector.broadcast %cst_67 : f32 to vector<8x1xf32>
    %318 = arith.mulf %317, %281 : vector<8x1xf32>
    %319 = arith.addf %279, %318 : vector<8x1xf32>
    %320 = vector.broadcast %269 : vector<1x128xf32> to vector<8x128xf32>
    %321 = vector.broadcast %319 : vector<8x1xf32> to vector<8x128xf32>
    %322 = arith.cmpf olt, %320, %321 : vector<8x128xf32>
    %323 = arith.andi %316, %322 : vector<8x128xi1>
    %324 = arith.extui %296 : vector<8x128xi1> to vector<8x128xi32>
    %325 = arith.sitofp %324 : vector<8x128xi32> to vector<8x128xf32>
    %cst_68 = arith.constant dense<0xFF800000> : vector<128xf32>
    %326 = vector.multi_reduction <maximumf>, %325, %cst_68 [0] : vector<8x128xf32> to vector<128xf32>
    %327 = vector.shape_cast %326 : vector<128xf32> to vector<1x128xf32>
    %328 = arith.extui %323 : vector<8x128xi1> to vector<8x128xi32>
    %329 = arith.sitofp %328 : vector<8x128xi32> to vector<8x128xf32>
    %cst_69 = arith.constant dense<0xFF800000> : vector<128xf32>
    %330 = vector.multi_reduction <maximumf>, %329, %cst_69 [0] : vector<8x128xf32> to vector<128xf32>
    %331 = vector.shape_cast %330 : vector<128xf32> to vector<1x128xf32>
    %332 = arith.addf %327, %331 : vector<1x128xf32>
    %cst_70 = arith.constant 0.000000e+00 : f32
    %333 = vector.broadcast %cst_70 : f32 to vector<1x128xf32>
    %334 = arith.cmpf ogt, %332, %333 : vector<1x128xf32>
    %335 = arith.andi %296, %323 : vector<8x128xi1>
    %336 = arith.subf %262, %260 : vector<1x128xf32>
    %337 = arith.subf %263, %261 : vector<1x128xf32>
    %338 = arith.mulf %336, %337 : vector<1x128xf32>
    %339 = arith.subf %272, %270 : vector<8x1xf32>
    %340 = arith.subf %273, %271 : vector<8x1xf32>
    %341 = arith.mulf %339, %340 : vector<8x1xf32>
    %342 = vector.broadcast %260 : vector<1x128xf32> to vector<8x128xf32>
    %343 = vector.broadcast %270 : vector<8x1xf32> to vector<8x128xf32>
    %344 = arith.maximumf %342, %343 : vector<8x128xf32>
    %345 = vector.broadcast %261 : vector<1x128xf32> to vector<8x128xf32>
    %346 = vector.broadcast %271 : vector<8x1xf32> to vector<8x128xf32>
    %347 = arith.maximumf %345, %346 : vector<8x128xf32>
    %348 = vector.broadcast %262 : vector<1x128xf32> to vector<8x128xf32>
    %349 = vector.broadcast %272 : vector<8x1xf32> to vector<8x128xf32>
    %350 = arith.minimumf %348, %349 : vector<8x128xf32>
    %351 = vector.broadcast %263 : vector<1x128xf32> to vector<8x128xf32>
    %352 = vector.broadcast %273 : vector<8x1xf32> to vector<8x128xf32>
    %353 = arith.minimumf %351, %352 : vector<8x128xf32>
    %354 = arith.subf %350, %344 : vector<8x128xf32>
    %cst_71 = arith.constant 0.000000e+00 : f32
    %355 = vector.broadcast %cst_71 : f32 to vector<8x128xf32>
    %356 = arith.maximumf %354, %355 : vector<8x128xf32>
    %357 = arith.subf %353, %347 : vector<8x128xf32>
    %cst_72 = arith.constant 0.000000e+00 : f32
    %358 = vector.broadcast %cst_72 : f32 to vector<8x128xf32>
    %359 = arith.maximumf %357, %358 : vector<8x128xf32>
    %360 = arith.mulf %356, %359 : vector<8x128xf32>
    %361 = vector.broadcast %338 : vector<1x128xf32> to vector<8x128xf32>
    %362 = vector.broadcast %341 : vector<8x1xf32> to vector<8x128xf32>
    %363 = arith.addf %361, %362 : vector<8x128xf32>
    %364 = arith.subf %363, %360 : vector<8x128xf32>
    %365 = arith.divf %360, %364 : vector<8x128xf32>
    %366 = vector.broadcast %260 : vector<1x128xf32> to vector<8x128xf32>
    %367 = vector.broadcast %270 : vector<8x1xf32> to vector<8x128xf32>
    %368 = arith.minimumf %366, %367 : vector<8x128xf32>
    %369 = vector.broadcast %261 : vector<1x128xf32> to vector<8x128xf32>
    %370 = vector.broadcast %271 : vector<8x1xf32> to vector<8x128xf32>
    %371 = arith.minimumf %369, %370 : vector<8x128xf32>
    %372 = vector.broadcast %262 : vector<1x128xf32> to vector<8x128xf32>
    %373 = vector.broadcast %272 : vector<8x1xf32> to vector<8x128xf32>
    %374 = arith.maximumf %372, %373 : vector<8x128xf32>
    %375 = vector.broadcast %263 : vector<1x128xf32> to vector<8x128xf32>
    %376 = vector.broadcast %273 : vector<8x1xf32> to vector<8x128xf32>
    %377 = arith.maximumf %375, %376 : vector<8x128xf32>
    %378 = arith.subf %374, %368 : vector<8x128xf32>
    %cst_73 = arith.constant 0.000000e+00 : f32
    %379 = vector.broadcast %cst_73 : f32 to vector<8x128xf32>
    %380 = arith.maximumf %378, %379 : vector<8x128xf32>
    %381 = arith.subf %377, %371 : vector<8x128xf32>
    %cst_74 = arith.constant 0.000000e+00 : f32
    %382 = vector.broadcast %cst_74 : f32 to vector<8x128xf32>
    %383 = arith.maximumf %381, %382 : vector<8x128xf32>
    %384 = arith.mulf %380, %383 : vector<8x128xf32>
    %385 = arith.subf %384, %364 : vector<8x128xf32>
    %386 = arith.divf %385, %384 : vector<8x128xf32>
    %387 = arith.subf %365, %386 : vector<8x128xf32>
    %388 = vector.broadcast %260 : vector<1x128xf32> to vector<8x128xf32>
    %389 = vector.broadcast %270 : vector<8x1xf32> to vector<8x128xf32>
    %390 = arith.subf %388, %389 : vector<8x128xf32>
    %391 = math.absf %390 : vector<8x128xf32>
    %392 = vector.extract_strided_slice %228 {offsets = [0, 0], sizes = [8, 1], strides = [1, 1]} : vector<8x4xf32> to vector<8x1xf32>
    %393 = vector.broadcast %392 : vector<8x1xf32> to vector<8x128xf32>
    %394 = arith.mulf %391, %393 : vector<8x128xf32>
    %395 = vector.broadcast %261 : vector<1x128xf32> to vector<8x128xf32>
    %396 = vector.broadcast %271 : vector<8x1xf32> to vector<8x128xf32>
    %397 = arith.subf %395, %396 : vector<8x128xf32>
    %398 = math.absf %397 : vector<8x128xf32>
    %399 = vector.extract_strided_slice %228 {offsets = [0, 1], sizes = [8, 1], strides = [1, 1]} : vector<8x4xf32> to vector<8x1xf32>
    %400 = vector.broadcast %399 : vector<8x1xf32> to vector<8x128xf32>
    %401 = arith.mulf %398, %400 : vector<8x128xf32>
    %402 = arith.addf %394, %401 : vector<8x128xf32>
    %403 = vector.broadcast %262 : vector<1x128xf32> to vector<8x128xf32>
    %404 = vector.broadcast %272 : vector<8x1xf32> to vector<8x128xf32>
    %405 = arith.subf %403, %404 : vector<8x128xf32>
    %406 = math.absf %405 : vector<8x128xf32>
    %407 = vector.extract_strided_slice %228 {offsets = [0, 2], sizes = [8, 1], strides = [1, 1]} : vector<8x4xf32> to vector<8x1xf32>
    %408 = vector.broadcast %407 : vector<8x1xf32> to vector<8x128xf32>
    %409 = arith.mulf %406, %408 : vector<8x128xf32>
    %410 = arith.addf %402, %409 : vector<8x128xf32>
    %411 = vector.broadcast %263 : vector<1x128xf32> to vector<8x128xf32>
    %412 = vector.broadcast %273 : vector<8x1xf32> to vector<8x128xf32>
    %413 = arith.subf %411, %412 : vector<8x128xf32>
    %414 = math.absf %413 : vector<8x128xf32>
    %415 = vector.extract_strided_slice %228 {offsets = [0, 3], sizes = [8, 1], strides = [1, 1]} : vector<8x4xf32> to vector<8x1xf32>
    %416 = vector.broadcast %415 : vector<8x1xf32> to vector<8x128xf32>
    %417 = arith.mulf %414, %416 : vector<8x128xf32>
    %418 = arith.addf %410, %417 : vector<8x128xf32>
    %cst_75 = arith.constant 5.000000e+00 : f32
    %419 = vector.broadcast %cst_75 : f32 to vector<8x128xf32>
    %420 = arith.mulf %419, %418 : vector<8x128xf32>
    %cst_76 = arith.constant 2.000000e+00 : f32
    %421 = vector.broadcast %cst_76 : f32 to vector<8x128xf32>
    %422 = arith.mulf %421, %259 : vector<8x128xf32>
    %423 = arith.addf %420, %422 : vector<8x128xf32>
    %cst_77 = arith.constant 2.000000e+00 : f32
    %424 = vector.broadcast %cst_77 : f32 to vector<8x128xf32>
    %425 = arith.mulf %424, %387 : vector<8x128xf32>
    %426 = arith.subf %423, %425 : vector<8x128xf32>
    %cst_78 = arith.constant 0.000000e+00 : f32
    %cst_79 = arith.constant 1.000000e+02 : f32
    %427 = vector.broadcast %cst_78 : f32 to vector<8x128xf32>
    %428 = vector.broadcast %cst_79 : f32 to vector<8x128xf32>
    %429 = arith.select %335, %427, %428 : vector<8x128xi1>, vector<8x128xf32>
    %430 = arith.addf %426, %429 : vector<8x128xf32>
    %cst_80 = arith.constant 0.000000e+00 : f32
    %cst_81 = arith.constant 1.000000e+04 : f32
    %431 = vector.broadcast %cst_80 : f32 to vector<1x128xf32>
    %432 = vector.broadcast %cst_81 : f32 to vector<1x128xf32>
    %433 = arith.select %334, %431, %432 : vector<1x128xi1>, vector<1x128xf32>
    %434 = vector.broadcast %433 : vector<1x128xf32> to vector<8x128xf32>
    %435 = arith.addf %430, %434 : vector<8x128xf32>
    %436 = tpu.concatenate %435, %365 in 0 : vector<8x128xf32>, vector<8x128xf32> -> vector<16x128xf32>
    %c1_82 = arith.constant 1 : index
    %c0_83 = arith.constant 0 : index
    %c0_84 = arith.constant 0 : index
    %437 = vector.load %arg4[%c1_82, %c0_83, %c0_84] : memref<2x16x128xf32, #tpu.memory_space<vmem>>, vector<1x16x128xf32>
    %438 = vector.shape_cast %437 : vector<1x16x128xf32> to vector<16x128xf32>
    %439 = vector.shape_cast %436 : vector<16x128xf32> to vector<1x16x128xf32>
    tpu.vector_store %arg4[%c1_82, %c0_83, %c0_84], %439 {strides = array<i32>} : memref<2x16x128xf32, #tpu.memory_space<vmem>>, vector<1x16x128xf32>,
    return
  }
  func.func @transform_0(%arg0: i32) -> (i32, i32, i32) {
    %c0_i32 = arith.constant 0 : i32
    %c0_i32_0 = arith.constant 0 : i32
    %c0_i32_1 = arith.constant 0 : i32
    return %arg0, %c0_i32, %c0_i32_0 : i32, i32, i32
  }
  func.func @transform_1(%arg0: i32) -> (i32, i32, i32) {
    %c0_i32 = arith.constant 0 : i32
    %c0_i32_0 = arith.constant 0 : i32
    %c0_i32_1 = arith.constant 0 : i32
    return %arg0, %c0_i32, %c0_i32_0 : i32, i32, i32
  }
  func.func @transform_2(%arg0: i32) -> (i32, i32, i32) {
    %c0_i32 = arith.constant 0 : i32
    %c0_i32_0 = arith.constant 0 : i32
    %c0_i32_1 = arith.constant 0 : i32
    return %arg0, %c0_i32, %c0_i32_0 : i32, i32, i32
  }
  func.func @transform_3(%arg0: i32) -> (i32, i32, i32) {
    %c0_i32 = arith.constant 0 : i32
    %c0_i32_0 = arith.constant 0 : i32
    %c0_i32_1 = arith.constant 0 : i32
    return %arg0, %c0_i32, %c0_i32_0 : i32, i32, i32
  }
}

</mosaic_0001>

<llo_original>
// kernel: _matcher_pipeline.1
$region0: #{_matcher_pipeline.1}
  #allocation0 [shape = 'u32[]', space=smem, size = 0x4, offset = 0x4, fixed_abs, tag = 'smem constant byte address 0x4 - core index']
  #allocation1 [shape = 'u32[144,128]{1,0:T(1,128)}', space=vmem, size = 0x12000, scoped, tag = 'internal scratch']
  %s0 = inlined_call_operand.vmem [shape: f32[2,16,128], index: 0, kind: input, shape index: {}]
  %s1 = inlined_call_operand.vmem [shape: f32[2,4,128], index: 1, kind: input, shape index: {}]
  %s2 = inlined_call_operand.vmem [shape: f32[2,8,24], index: 2, kind: input, shape index: {}]
  %s3 = inlined_call_operand.vmem [shape: f32[2,16,128], index: 3, kind: output, shape index: {}]
  %s4 = sld [smem:[#allocation0]]
  $region22: #{_matcher_pipeline.1} parent=0
    _
  %s6 = ssub.s32 1, %s4
  %s7 = scalar_select 0, %s6, %s4
  // Predicated region
  $region2: #{_matcher_pipeline.1} parent=0 // pred_check
    _
  $region3: #{_matcher_pipeline.1} parent=0 // pred_check_branch
    %9 = sbr.rel (0) target = $region5
  $region4: #{_matcher_pipeline.1} parent=0 // pred_region
    _
  $region5: #{_matcher_pipeline.1} parent=0 // pred_fallthru
    _
  // Predicated region
  $region6: #{_matcher_pipeline.1} parent=0 // pred_check
    _
  $region7: #{_matcher_pipeline.1} parent=0 // pred_check_branch
    %11 = sbr.rel (0) target = $region9
  $region8: #{_matcher_pipeline.1} parent=0 // pred_region
    _
  $region9: #{_matcher_pipeline.1} parent=0 // pred_fallthru
    _
  // Predicated region
  $region10: #{_matcher_pipeline.1} parent=0 // pred_check
    _
  $region11: #{_matcher_pipeline.1} parent=0 // pred_check_branch
    %13 = sbr.rel (0) target = $region13
  $region12: #{_matcher_pipeline.1} parent=0 // pred_region
    _
  $region13: #{_matcher_pipeline.1} parent=0 // pred_fallthru
    _
  %v15 = vld [vmem:[%s0] sm:$0xff]
  %v16 = vld [vmem:[%s0 + $0x8] sm:$0xff]
  %v17 = vld [vmem:[%s1] sm:$0xf]
  %v18 = vld [vmem:[%s2] sm:$0xff]
  %v19 = vpack.c.bf16 %v18, %v18
  %v20 = vpack.c.bf16 %v16, %v15
  %22 = vrot.lane.b32.xlu0 %v19, 124
  %v23 = vpop.permute.xlu0 %22
  %vm24 = vcmask 130048
  %v26 = vsel %vm24, %v23, 0
  %28 = vmatprep.subr.bf16.mxu0 0
  %29 = vmatpush1.bf16.msra.mxu0 0
  %30 = vmatprep.subr.bf16.mxu0 0
  %31 = vmatpush1.bf16.msra.mxu0 0
  %32 = vmatprep.subr.bf16.mxu0 0
  %33 = vmatpush1.bf16.msra.mxu0 0
  %34 = vmatprep.subr.bf16.mxu0 0
  %35 = vmatpush1.bf16.msra.mxu0 0
  %36 = vmatprep.subr.bf16.mxu0 0
  %37 = vmatpush1.bf16.msra.mxu0 0
  %38 = vmatprep.subr.bf16.mxu0 0
  %39 = vmatpush1.bf16.msra.mxu0 0
  %40 = vmatprep.subr.bf16.mxu0 0
  %41 = vmatpush1.bf16.msra.mxu0 0
  %42 = vmatprep.subr.bf16.mxu0 0
  %43 = vmatpush1.bf16.msra.mxu0 %v20
  %44 = vmatprep.subr.bf16.mxu0 0
  %45 = vmatpush2.bf16.msra.mxu0 0
  %46 = vmatprep.subr.bf16.mxu0 0
  %47 = vmatpush2.bf16.msra.mxu0 0
  %48 = vmatprep.subr.bf16.mxu0 0
  %49 = vmatpush2.bf16.msra.mxu0 0
  %50 = vmatprep.subr.bf16.mxu0 0
  %51 = vmatpush2.bf16.msra.mxu0 0
  %52 = vmatprep.subr.bf16.mxu0 0
  %53 = vmatpush2.bf16.msra.mxu0 0
  %54 = vmatprep.subr.bf16.mxu0 0
  %55 = vmatpush2.bf16.msra.mxu0 0
  %56 = vmatprep.subr.bf16.mxu0 0
  %57 = vmatpush2.bf16.msra.mxu0 0
  %58 = vmatprep.subr.bf16.mxu0 0
  %59 = vmatpush2.bf16.msra.mxu0 0
  %60 = vmatprep.mubr.bf16.mxu0 0
  %61 = vmatmul.mubr.bf16.gmra.mxu0 %v26
  %v62 = vpop.f32.mrf.mxu0
  %v63 = vadd.f32 0.0, %v62
  %v64 = vpop.f32.mrf.mxu0
  %v65 = vpop.f32.mrf.mxu0
  %v66 = vpop.f32.mrf.mxu0
  %67 = vdwg.mxu0
  %v68 = vxor.u32 %v63, 2147483648
  %v69 = vmul.f32 %v68, 1.442695
  %v70 = vpow.pop %v69
  %v71 = vadd.f32 %v70, 1.0
  %v72 = vrcp.pop %v71
  %v73 = vmul.f32 1.0, %v72
  %v74 = vmul.f32 %v73, %v73
  %v75 = vmul.f32 %v74, 0.75
  %v76 = vsub.f32 1.0, %v73
  %v77 = vadd.f32 %v76, 1e-08
  %v78 = vlog2.pop %v77
  %v79 = vmul.f32 %v78, 0.6931472
  %v80 = vsub.f32 0.0, %v79
  %v81 = vmul.f32 %v75, %v80
  %v82 = vmul.f32 %v76, %v76
  %v83 = vmul.f32 %v82, 0.25
  %v84 = vadd.f32 %v73, 1e-08
  %v85 = vlog2.pop %v84
  %v86 = vmul.f32 %v85, 0.6931472
  %v87 = vsub.f32 0.0, %v86
  %v88 = vmul.f32 %v83, %v87
  %v89 = vsub.f32 %v88, %v81
  %v91 = vrot.slane %v17, 2
  %v93 = vadd.f32 %v17, %v91
  %v94 = vmul.f32 %v93, 0.5
  %96 = vrot.lane.b32.xlu0 %v18, 126
  %v97 = vpop.permute.xlu0 %96
  %v99 = vadd.f32 %v18, %v97
  %v100 = vmul.f32 %v99, 0.5
  %101 = vrot.lane.b32.xlu0 %v18, 2
  %v102 = vpop.permute.xlu0 %101
  %v104 = vsub.f32 %v18, %v102
  %v105 = vlaneseq
  %v106 = vshrl.u32 %v105, 7
  %v107 = vsub.s32 0, %v106
  %v108 = vrot.slane %v94, %v107
  %109 = vset.pattern.permute.xlu0 0
  %110 = vperm.xlu0 %109, %v18
  %v111 = vpop.permute.xlu0 %110
  %vm113 = vcmp.gt.f32.partialorder %v108, %v111
  %114 = vset.pattern.permute.xlu0 2
  %115 = vperm.xlu0 %114, %v18
  %v116 = vpop.permute.xlu0 %115
  %vm118 = vcmp.lt.f32.partialorder %v108, %v116
  %vm119 = vmand %vm113, %vm118
  %v120 = vlaneseq
  %v121 = vshrl.u32 %v120, 7
  %v122 = vsub.s32 1, %v121
  %v123 = vrot.slane %v94, %v122
  %124 = vset.pattern.permute.xlu0 1
  %125 = vperm.xlu0 %124, %v18
  %v126 = vpop.permute.xlu0 %125
  %vm128 = vcmp.gt.f32.partialorder %v123, %v126
  %vm129 = vmand %vm119, %vm128
  %130 = vset.pattern.permute.xlu0 3
  %131 = vperm.xlu0 %130, %v18
  %v132 = vpop.permute.xlu0 %131
  %vm134 = vcmp.lt.f32.partialorder %v123, %v132
  %vm135 = vmand %vm129, %vm134
  %v136 = vmul.f32 %v104, 2.5
  %138 = vrot.lane.b32.xlu0 %v136, 126
  %v139 = vpop.permute.xlu0 %138
  %v141 = vsub.f32 %v100, %v139
  %143 = vset.pattern.permute.xlu0 0
  %144 = vperm.xlu0 %143, %v141
  %v145 = vpop.permute.xlu0 %144
  %vm147 = vcmp.gt.f32.partialorder %v108, %v145
  %v148 = vadd.f32 %v100, %v139
  %150 = vset.pattern.permute.xlu0 0
  %151 = vperm.xlu0 %150, %v148
  %v152 = vpop.permute.xlu0 %151
  %vm154 = vcmp.lt.f32.partialorder %v108, %v152
  %vm155 = vmand %vm147, %vm154
  %156 = vset.pattern.permute.xlu0 1
  %157 = vperm.xlu0 %156, %v141
  %v158 = vpop.permute.xlu0 %157
  %vm160 = vcmp.gt.f32.partialorder %v123, %v158
  %vm161 = vmand %vm155, %vm160
  %162 = vset.pattern.permute.xlu0 1
  %163 = vperm.xlu0 %162, %v148
  %v164 = vpop.permute.xlu0 %163
  %vm166 = vcmp.lt.f32.partialorder %v123, %v164
  %vm167 = vmand %vm161, %vm166
  %v168 = vsel %vm135, 1, 0
  %v169 = vcvt.s32.f32 %v168
  %v170 = vrot.slane %v169, 4
  %v171 = vmax.f32 %v169, %v170
  %v172 = vrot.slane %v171, 2
  %v173 = vmax.f32 %v171, %v172
  %v174 = vrot.slane %v173, 1
  %v175 = vmax.f32 %v173, %v174
  %v176 = vsel %vm167, 1, 0
  %v177 = vcvt.s32.f32 %v176
  %v178 = vrot.slane %v177, 4
  %v179 = vmax.f32 %v177, %v178
  %v180 = vrot.slane %v179, 2
  %v181 = vmax.f32 %v179, %v180
  %v182 = vrot.slane %v181, 1
  %v183 = vmax.f32 %v181, %v182
  %v184 = vadd.f32 %v175, %v183
  %vm185 = vcmp.gt.f32.partialorder %v184, 0.0
  %vm186 = vmand %vm135, %vm167
  %v187 = vrot.slane %v17, 6
  %v189 = vsub.f32 %v17, %v187
  %v191 = vrot.slane %v189, 1
  %v193 = vmul.f32 %v189, %v191
  %195 = vrot.lane.b32.xlu0 %v104, 127
  %v196 = vpop.permute.xlu0 %195
  %v198 = vmul.f32 %v104, %v196
  %v199 = vlaneseq
  %v200 = vshrl.u32 %v199, 7
  %v201 = vsub.s32 0, %v200
  %v202 = vrot.slane %v17, %v201
  %v203 = vmax.f32 %v202, %v111
  %v204 = vlaneseq
  %v205 = vshrl.u32 %v204, 7
  %v206 = vsub.s32 1, %v205
  %v207 = vrot.slane %v17, %v206
  %v208 = vmax.f32 %v207, %v126
  %v209 = vlaneseq
  %v210 = vshrl.u32 %v209, 7
  %v211 = vsub.s32 2, %v210
  %v212 = vrot.slane %v17, %v211
  %v213 = vmin.f32 %v212, %v116
  %v214 = vlaneseq
  %v215 = vshrl.u32 %v214, 7
  %v216 = vsub.s32 3, %v215
  %v217 = vrot.slane %v17, %v216
  %v218 = vmin.f32 %v217, %v132
  %v219 = vsub.f32 %v213, %v203
  %v220 = vmax.f32 %v219, 0.0
  %v221 = vsub.f32 %v218, %v208
  %v222 = vmax.f32 %v221, 0.0
  %v223 = vmul.f32 %v220, %v222
  %v224 = vlaneseq
  %v225 = vshrl.u32 %v224, 7
  %v226 = vsub.s32 2, %v225
  %v227 = vrot.slane %v193, %v226
  %229 = vset.pattern.permute.xlu0 2
  %230 = vperm.xlu0 %229, %v198
  %v231 = vpop.permute.xlu0 %230
  %v233 = vadd.f32 %v227, %v231
  %v234 = vsub.f32 %v233, %v223
  %v235 = vrcp.pop %v234
  %v236 = vmul.f32 %v223, %v235
  %v237 = vmin.f32 %v202, %v111
  %v238 = vmin.f32 %v207, %v126
  %v239 = vmax.f32 %v212, %v116
  %v240 = vmax.f32 %v217, %v132
  %v241 = vsub.f32 %v239, %v237
  %v242 = vmax.f32 %v241, 0.0
  %v243 = vsub.f32 %v240, %v238
  %v244 = vmax.f32 %v243, 0.0
  %v245 = vmul.f32 %v242, %v244
  %v246 = vsub.f32 %v245, %v234
  %v247 = vrcp.pop %v245
  %v248 = vmul.f32 %v246, %v247
  %v249 = vsub.f32 %v236, %v248
  %v250 = vsub.f32 %v202, %v111
  %v251 = vand.u32 2147483647, %v250
  %252 = vset.pattern.permute.xlu0 20
  %253 = vperm.xlu0 %252, %v18
  %v254 = vpop.permute.xlu0 %253
  %v256 = vmul.f32 %v251, %v254
  %v257 = vsub.f32 %v207, %v126
  %v258 = vand.u32 2147483647, %v257
  %259 = vset.pattern.permute.xlu0 21
  %260 = vperm.xlu0 %259, %v18
  %v261 = vpop.permute.xlu0 %260
  %v263 = vmul.f32 %v258, %v261
  %v264 = vadd.f32 %v256, %v263
  %v265 = vsub.f32 %v212, %v116
  %v266 = vand.u32 2147483647, %v265
  %267 = vset.pattern.permute.xlu0 22
  %268 = vperm.xlu0 %267, %v18
  %v269 = vpop.permute.xlu0 %268
  %v271 = vmul.f32 %v266, %v269
  %v272 = vadd.f32 %v264, %v271
  %v273 = vsub.f32 %v217, %v132
  %v274 = vand.u32 2147483647, %v273
  %275 = vset.pattern.permute.xlu0 23
  %276 = vperm.xlu0 %275, %v18
  %v277 = vpop.permute.xlu0 %276
  %v279 = vmul.f32 %v274, %v277
  %v280 = vadd.f32 %v272, %v279
  %v281 = vmul.f32 %v280, 5.0
  %v282 = vmul.f32 %v89, 2.0
  %v283 = vadd.f32 %v281, %v282
  %v284 = vmul.f32 %v249, 2.0
  %v285 = vsub.f32 %v283, %v284
  %v286 = vsel %vm186, 0.0, 100.0
  %v287 = vadd.f32 %v285, %v286
  %v288 = vsel %vm185, 0.0, 10000.0
  %v289 = vadd.f32 %v287, %v288
  %290 = vst [vmem:[%s3] sm:$0xff] %v289
  %291 = vst [vmem:[%s3 + $0x8] sm:$0xff] %v236
  %s292 = scalar_lea.vmem %s0, 16
  %v293 = vld [vmem:[%s292] sm:$0xff]
  %v294 = vld [vmem:[%s292 + $0x8] sm:$0xff]
  %s295 = scalar_lea.vmem %s1, 4
  %v296 = vld [vmem:[%s295] sm:$0xf]
  %s297 = scalar_lea.vmem %s2, 8
  %v298 = vld [vmem:[%s297] sm:$0xff]
  %v299 = vpack.c.bf16 %v298, %v298
  %v300 = vpack.c.bf16 %v294, %v293
  %302 = vrot.lane.b32.xlu0 %v299, 124
  %v303 = vpop.permute.xlu0 %302
  %v305 = vsel %vm24, %v303, 0
  %307 = vmatprep.subr.bf16.mxu0 0
  %308 = vmatpush1.bf16.msra.mxu0 0
  %309 = vmatprep.subr.bf16.mxu0 0
  %310 = vmatpush1.bf16.msra.mxu0 0
  %311 = vmatprep.subr.bf16.mxu0 0
  %312 = vmatpush1.bf16.msra.mxu0 0
  %313 = vmatprep.subr.bf16.mxu0 0
  %314 = vmatpush1.bf16.msra.mxu0 0
  %315 = vmatprep.subr.bf16.mxu0 0
  %316 = vmatpush1.bf16.msra.mxu0 0
  %317 = vmatprep.subr.bf16.mxu0 0
  %318 = vmatpush1.bf16.msra.mxu0 0
  %319 = vmatprep.subr.bf16.mxu0 0
  %320 = vmatpush1.bf16.msra.mxu0 0
  %321 = vmatprep.subr.bf16.mxu0 0
  %322 = vmatpush1.bf16.msra.mxu0 %v300
  %323 = vmatprep.subr.bf16.mxu0 0
  %324 = vmatpush2.bf16.msra.mxu0 0
  %325 = vmatprep.subr.bf16.mxu0 0
  %326 = vmatpush2.bf16.msra.mxu0 0
  %327 = vmatprep.subr.bf16.mxu0 0
  %328 = vmatpush2.bf16.msra.mxu0 0
  %329 = vmatprep.subr.bf16.mxu0 0
  %330 = vmatpush2.bf16.msra.mxu0 0
  %331 = vmatprep.subr.bf16.mxu0 0
  %332 = vmatpush2.bf16.msra.mxu0 0
  %333 = vmatprep.subr.bf16.mxu0 0
  %334 = vmatpush2.bf16.msra.mxu0 0
  %335 = vmatprep.subr.bf16.mxu0 0
  %336 = vmatpush2.bf16.msra.mxu0 0
  %337 = vmatprep.subr.bf16.mxu0 0
  %338 = vmatpush2.bf16.msra.mxu0 0
  %339 = vmatprep.mubr.bf16.mxu0 0
  %340 = vmatmul.mubr.bf16.gmra.mxu0 %v305
  %v341 = vpop.f32.mrf.mxu0
  %v342 = vadd.f32 0.0, %v341
  %v343 = vpop.f32.mrf.mxu0
  %v344 = vpop.f32.mrf.mxu0
  %v345 = vpop.f32.mrf.mxu0
  %346 = vdwg.mxu0
  %v347 = vxor.u32 %v342, 2147483648
  %v348 = vmul.f32 %v347, 1.442695
  %v349 = vpow.pop %v348
  %v350 = vadd.f32 %v349, 1.0
  %v351 = vrcp.pop %v350
  %v352 = vmul.f32 1.0, %v351
  %v353 = vmul.f32 %v352, %v352
  %v354 = vmul.f32 %v353, 0.75
  %v355 = vsub.f32 1.0, %v352
  %v356 = vadd.f32 %v355, 1e-08
  %v357 = vlog2.pop %v356
  %v358 = vmul.f32 %v357, 0.6931472
  %v359 = vsub.f32 0.0, %v358
  %v360 = vmul.f32 %v354, %v359
  %v361 = vmul.f32 %v355, %v355
  %v362 = vmul.f32 %v361, 0.25
  %v363 = vadd.f32 %v352, 1e-08
  %v364 = vlog2.pop %v363
  %v365 = vmul.f32 %v364, 0.6931472
  %v366 = vsub.f32 0.0, %v365
  %v367 = vmul.f32 %v362, %v366
  %v368 = vsub.f32 %v367, %v360
  %v370 = vrot.slane %v296, 2
  %v372 = vadd.f32 %v296, %v370
  %v373 = vmul.f32 %v372, 0.5
  %375 = vrot.lane.b32.xlu0 %v298, 126
  %v376 = vpop.permute.xlu0 %375
  %v378 = vadd.f32 %v298, %v376
  %v379 = vmul.f32 %v378, 0.5
  %380 = vrot.lane.b32.xlu0 %v298, 2
  %v381 = vpop.permute.xlu0 %380
  %v383 = vsub.f32 %v298, %v381
  %v384 = vlaneseq
  %v385 = vshrl.u32 %v384, 7
  %v386 = vsub.s32 0, %v385
  %v387 = vrot.slane %v373, %v386
  %388 = vset.pattern.permute.xlu0 0
  %389 = vperm.xlu0 %388, %v298
  %v390 = vpop.permute.xlu0 %389
  %vm392 = vcmp.gt.f32.partialorder %v387, %v390
  %393 = vset.pattern.permute.xlu0 2
  %394 = vperm.xlu0 %393, %v298
  %v395 = vpop.permute.xlu0 %394
  %vm397 = vcmp.lt.f32.partialorder %v387, %v395
  %vm398 = vmand %vm392, %vm397
  %v399 = vlaneseq
  %v400 = vshrl.u32 %v399, 7
  %v401 = vsub.s32 1, %v400
  %v402 = vrot.slane %v373, %v401
  %403 = vset.pattern.permute.xlu0 1
  %404 = vperm.xlu0 %403, %v298
  %v405 = vpop.permute.xlu0 %404
  %vm407 = vcmp.gt.f32.partialorder %v402, %v405
  %vm408 = vmand %vm398, %vm407
  %409 = vset.pattern.permute.xlu0 3
  %410 = vperm.xlu0 %409, %v298
  %v411 = vpop.permute.xlu0 %410
  %vm413 = vcmp.lt.f32.partialorder %v402, %v411
  %vm414 = vmand %vm408, %vm413
  %v415 = vmul.f32 %v383, 2.5
  %417 = vrot.lane.b32.xlu0 %v415, 126
  %v418 = vpop.permute.xlu0 %417
  %v420 = vsub.f32 %v379, %v418
  %422 = vset.pattern.permute.xlu0 0
  %423 = vperm.xlu0 %422, %v420
  %v424 = vpop.permute.xlu0 %423
  %vm426 = vcmp.gt.f32.partialorder %v387, %v424
  %v427 = vadd.f32 %v379, %v418
  %429 = vset.pattern.permute.xlu0 0
  %430 = vperm.xlu0 %429, %v427
  %v431 = vpop.permute.xlu0 %430
  %vm433 = vcmp.lt.f32.partialorder %v387, %v431
  %vm434 = vmand %vm426, %vm433
  %435 = vset.pattern.permute.xlu0 1
  %436 = vperm.xlu0 %435, %v420
  %v437 = vpop.permute.xlu0 %436
  %vm439 = vcmp.gt.f32.partialorder %v402, %v437
  %vm440 = vmand %vm434, %vm439
  %441 = vset.pattern.permute.xlu0 1
  %442 = vperm.xlu0 %441, %v427
  %v443 = vpop.permute.xlu0 %442
  %vm445 = vcmp.lt.f32.partialorder %v402, %v443
  %vm446 = vmand %vm440, %vm445
  %v447 = vsel %vm414, 1, 0
  %v448 = vcvt.s32.f32 %v447
  %v449 = vrot.slane %v448, 4
  %v450 = vmax.f32 %v448, %v449
  %v451 = vrot.slane %v450, 2
  %v452 = vmax.f32 %v450, %v451
  %v453 = vrot.slane %v452, 1
  %v454 = vmax.f32 %v452, %v453
  %v455 = vsel %vm446, 1, 0
  %v456 = vcvt.s32.f32 %v455
  %v457 = vrot.slane %v456, 4
  %v458 = vmax.f32 %v456, %v457
  %v459 = vrot.slane %v458, 2
  %v460 = vmax.f32 %v458, %v459
  %v461 = vrot.slane %v460, 1
  %v462 = vmax.f32 %v460, %v461
  %v463 = vadd.f32 %v454, %v462
  %vm464 = vcmp.gt.f32.partialorder %v463, 0.0
  %vm465 = vmand %vm414, %vm446
  %v466 = vrot.slane %v296, 6
  %v468 = vsub.f32 %v296, %v466
  %v470 = vrot.slane %v468, 1
  %v472 = vmul.f32 %v468, %v470
  %474 = vrot.lane.b32.xlu0 %v383, 127
  %v475 = vpop.permute.xlu0 %474
  %v477 = vmul.f32 %v383, %v475
  %v478 = vlaneseq
  %v479 = vshrl.u32 %v478, 7
  %v480 = vsub.s32 0, %v479
  %v481 = vrot.slane %v296, %v480
  %v482 = vmax.f32 %v481, %v390
  %v483 = vlaneseq
  %v484 = vshrl.u32 %v483, 7
  %v485 = vsub.s32 1, %v484
  %v486 = vrot.slane %v296, %v485
  %v487 = vmax.f32 %v486, %v405
  %v488 = vlaneseq
  %v489 = vshrl.u32 %v488, 7
  %v490 = vsub.s32 2, %v489
  %v491 = vrot.slane %v296, %v490
  %v492 = vmin.f32 %v491, %v395
  %v493 = vlaneseq
  %v494 = vshrl.u32 %v493, 7
  %v495 = vsub.s32 3, %v494
  %v496 = vrot.slane %v296, %v495
  %v497 = vmin.f32 %v496, %v411
  %v498 = vsub.f32 %v492, %v482
  %v499 = vmax.f32 %v498, 0.0
  %v500 = vsub.f32 %v497, %v487
  %v501 = vmax.f32 %v500, 0.0
  %v502 = vmul.f32 %v499, %v501
  %v503 = vlaneseq
  %v504 = vshrl.u32 %v503, 7
  %v505 = vsub.s32 2, %v504
  %v506 = vrot.slane %v472, %v505
  %508 = vset.pattern.permute.xlu0 2
  %509 = vperm.xlu0 %508, %v477
  %v510 = vpop.permute.xlu0 %509
  %v512 = vadd.f32 %v506, %v510
  %v513 = vsub.f32 %v512, %v502
  %v514 = vrcp.pop %v513
  %v515 = vmul.f32 %v502, %v514
  %v516 = vmin.f32 %v481, %v390
  %v517 = vmin.f32 %v486, %v405
  %v518 = vmax.f32 %v491, %v395
  %v519 = vmax.f32 %v496, %v411
  %v520 = vsub.f32 %v518, %v516
  %v521 = vmax.f32 %v520, 0.0
  %v522 = vsub.f32 %v519, %v517
  %v523 = vmax.f32 %v522, 0.0
  %v524 = vmul.f32 %v521, %v523
  %v525 = vsub.f32 %v524, %v513
  %v526 = vrcp.pop %v524
  %v527 = vmul.f32 %v525, %v526
  %v528 = vsub.f32 %v515, %v527
  %v529 = vsub.f32 %v481, %v390
  %v530 = vand.u32 2147483647, %v529
  %531 = vset.pattern.permute.xlu0 20
  %532 = vperm.xlu0 %531, %v298
  %v533 = vpop.permute.xlu0 %532
  %v535 = vmul.f32 %v530, %v533
  %v536 = vsub.f32 %v486, %v405
  %v537 = vand.u32 2147483647, %v536
  %538 = vset.pattern.permute.xlu0 21
  %539 = vperm.xlu0 %538, %v298
  %v540 = vpop.permute.xlu0 %539
  %v542 = vmul.f32 %v537, %v540
  %v543 = vadd.f32 %v535, %v542
  %v544 = vsub.f32 %v491, %v395
  %v545 = vand.u32 2147483647, %v544
  %546 = vset.pattern.permute.xlu0 22
  %547 = vperm.xlu0 %546, %v298
  %v548 = vpop.permute.xlu0 %547
  %v550 = vmul.f32 %v545, %v548
  %v551 = vadd.f32 %v543, %v550
  %v552 = vsub.f32 %v496, %v411
  %v553 = vand.u32 2147483647, %v552
  %554 = vset.pattern.permute.xlu0 23
  %555 = vperm.xlu0 %554, %v298
  %v556 = vpop.permute.xlu0 %555
  %v558 = vmul.f32 %v553, %v556
  %v559 = vadd.f32 %v551, %v558
  %v560 = vmul.f32 %v559, 5.0
  %v561 = vmul.f32 %v368, 2.0
  %v562 = vadd.f32 %v560, %v561
  %v563 = vmul.f32 %v528, 2.0
  %v564 = vsub.f32 %v562, %v563
  %v565 = vsel %vm465, 0.0, 100.0
  %v566 = vadd.f32 %v564, %v565
  %v567 = vsel %vm464, 0.0, 10000.0
  %v568 = vadd.f32 %v566, %v567
  %s569 = scalar_lea.vmem %s3, 16
  %570 = vst [vmem:[%s569] sm:$0xff] %v568
  %571 = vst [vmem:[%s569 + $0x8] sm:$0xff] %v515
  // Predicated region
  $region14: #{_matcher_pipeline.1} parent=0 // pred_check
    _
  $region15: #{_matcher_pipeline.1} parent=0 // pred_check_branch
    %573 = sbr.rel (0) target = $region17
  $region16: #{_matcher_pipeline.1} parent=0 // pred_region
    _
  $region17: #{_matcher_pipeline.1} parent=0 // pred_fallthru
    _
  // Predicated region
  $region18: #{_matcher_pipeline.1} parent=0 // pred_check
    _
  $region19: #{_matcher_pipeline.1} parent=0 // pred_check_branch
    %575 = sbr.rel (0) target = $region21
  $region20: #{_matcher_pipeline.1} parent=0 // pred_region
    _
  $region21: #{_matcher_pipeline.1} parent=0 // pred_fallthru
    _

</llo_original>
